<compile_context>
chip_gen: v5e
topology: v5e:2x2
jax: 0.10.0
libtpu: 0.0.40
codegen_flags: <defaults>
</compile_context>

<pallas_src>
import jax
import jax.numpy as jnp
from jax.experimental import pallas as pl
from jax.experimental.pallas import tpu as pltpu


def _align8(v):
    return -(-v // 8) * 8


def _param_offsets(Fin, H1, H2):
    # Sublane-aligned (multiple-of-8) row offsets inside the packed block.
    o_w1 = 0
    o_b1 = o_w1 + _align8(Fin)
    o_w2 = o_b1 + 8
    o_b2 = o_w2 + _align8(H1)
    o_w3 = o_b2 + 8
    o_b3 = o_w3 + _align8(H2)
    o_bl = o_b3 + 8
    rows = o_bl + 8
    return (o_w1, o_b1, o_w2, o_b2, o_w3, o_b3, o_bl, rows)


def _make_kernel(TB, N, Fin, H1, H2, H3):
    o_w1, o_b1, o_w2, o_b2, o_w3, o_b3, o_bl, _ = _param_offsets(Fin, H1, H2)

    def kernel(x_ref, adj_ref, p_ref, wl_ref, out_ref):
        x = x_ref[...]            # (TB, N, Fin) bf16
        adj = adj_ref[...]        # (TB, N, N)   bf16

        # Aligned slices of the packed f32 parameter block (free ref views).
        w1 = p_ref[o_w1:o_w1 + Fin, 0:H1].astype(jnp.bfloat16)   # (Fin, H1)
        b1 = p_ref[o_b1:o_b1 + 1, 0:H1]                          # (1, H1) f32
        w2 = p_ref[o_w2:o_w2 + H1, 0:H2].astype(jnp.bfloat16)    # (H1, H2)
        b2 = p_ref[o_b2:o_b2 + 1, 0:H2]                          # (1, H2) f32
        w3 = p_ref[o_w3:o_w3 + H2, 0:H3].astype(jnp.bfloat16)    # (H2, H3)
        b3 = p_ref[o_b3:o_b3 + 1, 0:H3]                          # (1, H3) f32
        bl = p_ref[o_bl:o_bl + 1, 0:1]                           # (1, 1)  f32
        wl_col = wl_ref[...]                                     # (N, 1)  f32

        def gconv(h_bf16, w_bf16, b_f32, fin, fout):
            # Shared-weight feature matmul over all TB*N node rows (one pass),
            # f32 accumulation, then per-batch neighbourhood aggregation
            # adj @ (.), bias, ReLU.
            hw = jnp.dot(h_bf16.reshape(TB * N, fin), w_bf16,
                         preferred_element_type=jnp.float32)
            hw = hw.reshape(TB, N, fout).astype(jnp.bfloat16)
            z = jnp.einsum('bij,bjf->bif', adj, hw,
                           preferred_element_type=jnp.float32) + b_f32
            return jnp.maximum(z, 0.0)

        h = gconv(x, w1, b1, Fin, H1).astype(jnp.bfloat16)     # (TB, N, H1)
        h = gconv(h, w2, b2, H1, H2).astype(jnp.bfloat16)      # (TB, N, H2)
        h = gconv(h, w3, b3, H2, H3)                           # (TB, N, 1) f32

        # Linear(numV, 1) + sigmoid: weighted reduce over the N nodes (O(B*N),
        # negligible vs. the O(B*N^2) aggregations above), all in f32.
        s = jnp.sum(h * wl_col, axis=1) + bl                   # (TB, 1)
        pred = jax.nn.sigmoid(s)                               # (TB, 1)

        # Lane-dense store: all TB results of this grid step as one row.
        out_ref[...] = pred.T.reshape(1, 1, TB)

    return kernel


def discriminator_ft(x, adj, params, *, batch_block=None):
    """x: (B, N, 2), adj: (B, N, N) -> pred (B, 1, 1) f32."""
    B, N, Fin = x.shape
    w1, b1, w2, b2, w3, b3, wl, bl = params
    H1, H2, H3 = w1.shape[1], w2.shape[1], w3.shape[1]

    lane = 128
    rup = lambda v, m: -(-v // m) * m

    # --- generation-aware VMEM budget --------------------------------------
    try:
        info = pltpu.get_tpu_info()
        vmem_cap = int(getattr(info, "vmem_capacity_bytes", 64 * 1024 * 1024))
    except Exception:
        vmem_cap = 64 * 1024 * 1024
    vmem_budget = int(vmem_cap * 0.40)
    vmem_limit = min(int(vmem_cap * 0.60), 100 * 1024 * 1024)

    # --- packed parameter block layout (sublane-aligned, 128 lanes) --------
    (o_w1, o_b1, o_w2, o_b2, o_w3, o_b3, o_bl, R) = _param_offsets(Fin, H1, H2)
    C = rup(max(H1, H2, H3, 1), lane)

    # --- batch block size: lane-padding-aware VMEM estimate, G >= 2, TB | B --
    N_lanes = rup(N, lane)
    if batch_block is None:
        per_batch = (
            2 * (N * N_lanes * 2)        # adj tile, bf16, double-buffered
            + 2 * (N * lane * 2)         # x tile (Fin padded to 128 lanes), dbl-buf
            + 6 * N * lane * 4           # live f32/bf16 intermediates (hw, z, h, ...)
        )
        fixed = (
            2 * (R * C * 4)              # packed params block, double-buffered
            + 2 * (_align8(N) * lane * 4)  # wl column input, double-buffered
            + 2 * (8 * lane * 4)         # output tile
        )
        tb_cap = max(1, (vmem_budget - fixed) // max(per_batch, 1))
        if B >= 2:
            # keep G = B / TB >= 2 so v7x megacore + DMA pipelining engage
            tb_cap = min(tb_cap, max(1, B // 2))
        TB = 1
        for d in range(1, min(tb_cap, B) + 1):   # largest divisor of B <= cap
            if B % d == 0:
                TB = d
    else:
        TB = int(batch_block)
        assert B % TB == 0, "batch_block must divide batch size"
    G = B // TB

    # --- pack all small weights & biases into ONE aligned f32 block --------
    p = jnp.zeros((R, C), jnp.float32)
    p = p.at[o_w1:o_w1 + Fin, :H1].set(jnp.asarray(w1, jnp.float32))
    p = p.at[o_b1:o_b1 + 1, :H1].set(jnp.asarray(b1, jnp.float32).reshape(1, H1))
    p = p.at[o_w2:o_w2 + H1, :H2].set(jnp.asarray(w2, jnp.float32))
    p = p.at[o_b2:o_b2 + 1, :H2].set(jnp.asarray(b2, jnp.float32).reshape(1, H2))
    p = p.at[o_w3:o_w3 + H2, :H3].set(jnp.asarray(w3, jnp.float32))
    p = p.at[o_b3:o_b3 + 1, :H3].set(jnp.asarray(b3, jnp.float32).reshape(1, H3))
    p = p.at[o_bl:o_bl + 1, :1].set(jnp.asarray(bl, jnp.float32).reshape(1, 1))

    wl_col = jnp.asarray(wl, jnp.float32).reshape(N, 1)   # Linear weight^T

    # bf16 MXU operands (f32 accumulation inside the kernel).
    x_bf = x.astype(jnp.bfloat16)
    adj_bf = adj.astype(jnp.bfloat16)

    flops = (2 * B * N * N * (H1 + H2 + H3)
             + 2 * B * N * (Fin * H1 + H1 * H2 + H2 * H3)
             + 2 * B * N)
    bytes_accessed = (adj_bf.size * 2 + x_bf.size * 2
                      + R * C * 4 + N * 4 + B * 4)
    cost = pl.CostEstimate(flops=int(flops), transcendentals=int(B),
                           bytes_accessed=int(bytes_accessed))

    kernel = _make_kernel(TB, N, Fin, H1, H2, H3)

    out = pl.pallas_call(
        kernel,
        out_shape=jax.ShapeDtypeStruct((G, 1, TB), jnp.float32),
        grid_spec=pltpu.PrefetchScalarGridSpec(
            num_scalar_prefetch=0,
            grid=(G,),
            in_specs=[
                pl.BlockSpec((TB, N, Fin), lambda g: (g, 0, 0)),  # x block
                pl.BlockSpec((TB, N, N),   lambda g: (g, 0, 0)),  # adj block
                pl.BlockSpec((R, C),       lambda g: (0, 0)),     # packed params
                pl.BlockSpec((N, 1),       lambda g: (0, 0)),     # linear weight
            ],
            out_specs=pl.BlockSpec((1, 1, TB), lambda g: (g, 0, 0)),
        ),
        compiler_params=pltpu.CompilerParams(
            dimension_semantics=("parallel",),     # batch blocks across TCs
            vmem_limit_bytes=int(vmem_limit),
        ),
        cost_estimate=cost,
    )(x_bf, adj_bf, p, wl_col)

    # (G, 1, TB) flattens in exactly batch order; no padding was added.
    return out.reshape(B, 1, 1)


def _reference(x, adj, params):
    w1, b1, w2, b2, w3, b3, wl, bl = params
    h = jax.nn.relu(adj @ (x @ w1) + b1)
    h = jax.nn.relu(adj @ (h @ w2) + b2)
    h = jax.nn.relu(adj @ (h @ w3) + b3)            # (B, N, 1)
    B, N, _ = x.shape
    h = h.reshape(B, 1, N)                          # .view(B, 1, -1)
    s = h @ wl.T + bl                               # Linear(numV, 1)
    return jax.nn.sigmoid(s)                        # (B, 1, 1)


def _glorot(key, shape):
    fan_in, fan_out = shape
    lim = (6.0 / (fan_in + fan_out)) ** 0.5
    return jax.random.uniform(key, shape, jnp.float32, -lim, lim)


if __name__ == "__main__":
    B, N = 2, 8                      # batch=2, numV=8 nodes, 2 input features
    key = jax.random.PRNGKey(0)
    k = jax.random.split(key, 8)

    # GraphConvolution weights (in, out) + biases; Linear(numV, 1) xavier weight.
    w1 = _glorot(k[0], (2, 4)); b1 = 0.01 * jnp.ones((1, 4), jnp.float32)
    w2 = _glorot(k[1], (4, 6)); b2 = 0.01 * jnp.ones((1, 6), jnp.float32)
    w3 = _glorot(k[2], (6, 1)); b3 = 0.01 * jnp.ones((1, 1), jnp.float32)
    wl = _glorot(k[3], (1, N)); bl = jnp.zeros((1, 1), jnp.float32)
    params = (w1, b1, w2, b2, w3, b3, wl, bl)

    # Inputs: node features (B, N, 2) and a row-normalized adjacency (B, N, N).
    x = jax.random.normal(k[4], (B, N, 2), jnp.float32)
    a = (jax.random.uniform(k[5], (B, N, N)) > 0.5).astype(jnp.float32)
    a = a + jnp.eye(N, dtype=jnp.float32)[None]
    adj = a / jnp.sum(a, axis=-1, keepdims=True)

    out = discriminator_ft(x, adj, params)
    out = jax.block_until_ready(out)

    ref = _reference(x, adj, params)
    assert out.shape == (B, 1, 1)
    # bf16 MXU operands -> relaxed tolerance vs. the f32 reference.
    assert jnp.allclose(out, ref, atol=2e-2, rtol=2e-2), (out, ref)
    print("KERNEL_OK")
</pallas_src>

<mosaic_0001>
module attributes {stable_mosaic.version = 11 : i64} {
  func.func @kernel(%arg0: i32, %arg1: memref<1x8x2xbf16, #tpu.memory_space<vmem>>, %arg2: memref<1x8x8xbf16, #tpu.memory_space<vmem>>, %arg3: memref<56x128xf32, #tpu.memory_space<vmem>>, %arg4: memref<8x1xf32, #tpu.memory_space<vmem>>, %arg5: memref<1x1x1xf32, #tpu.memory_space<vmem>>) attributes {dimension_semantics = [#tpu.dimension_semantics<parallel>], iteration_bounds = array<i64: 2>, scalar_prefetch = 0 : i64, scratch_operands = 0 : i64, tpu.core_type = #tpu.core_type<tc>, window_params = [{transform_indices = @transform_0, window_bounds = array<i64: 1, 8, 2>}, {transform_indices = @transform_1, window_bounds = array<i64: 1, 8, 8>}, {pipeline_mode = #tpu.pipeline_mode<synchronous>, transform_indices = @transform_2, window_bounds = array<i64: 56, 128>}, {pipeline_mode = #tpu.pipeline_mode<synchronous>, transform_indices = @transform_3, window_bounds = array<i64: 8, 1>}, {transform_indices = @transform_4, window_bounds = array<i64: 1, 1, 1>}]} {
    %c0 = arith.constant 0 : index
    %c0_0 = arith.constant 0 : index
    %c0_1 = arith.constant 0 : index
    %0 = vector.load %arg1[%c0, %c0_0, %c0_1] : memref<1x8x2xbf16, #tpu.memory_space<vmem>>, vector<1x8x2xbf16>
    %c0_2 = arith.constant 0 : index
    %c0_3 = arith.constant 0 : index
    %c0_4 = arith.constant 0 : index
    %1 = vector.load %arg2[%c0_2, %c0_3, %c0_4] : memref<1x8x8xbf16, #tpu.memory_space<vmem>>, vector<1x8x8xbf16>
    %c0_5 = arith.constant 0 : index
    %c0_6 = arith.constant 0 : index
    %2 = vector.load %arg3[%c0_5, %c0_6] : memref<56x128xf32, #tpu.memory_space<vmem>>, vector<2x4xf32>
    %3 = arith.truncf %2 : vector<2x4xf32> to vector<2x4xbf16>
    %c8 = arith.constant 8 : index
    %c0_7 = arith.constant 0 : index
    %4 = vector.load %arg3[%c8, %c0_7] : memref<56x128xf32, #tpu.memory_space<vmem>>, vector<1x4xf32>
    %c16 = arith.constant 16 : index
    %c0_8 = arith.constant 0 : index
    %5 = vector.load %arg3[%c16, %c0_8] : memref<56x128xf32, #tpu.memory_space<vmem>>, vector<4x6xf32>
    %6 = arith.truncf %5 : vector<4x6xf32> to vector<4x6xbf16>
    %c24 = arith.constant 24 : index
    %c0_9 = arith.constant 0 : index
    %7 = vector.load %arg3[%c24, %c0_9] : memref<56x128xf32, #tpu.memory_space<vmem>>, vector<1x6xf32>
    %c32 = arith.constant 32 : index
    %c0_10 = arith.constant 0 : index
    %8 = vector.load %arg3[%c32, %c0_10] : memref<56x128xf32, #tpu.memory_space<vmem>>, vector<6x1xf32>
    %9 = arith.truncf %8 : vector<6x1xf32> to vector<6x1xbf16>
    %c40 = arith.constant 40 : index
    %c0_11 = arith.constant 0 : index
    %10 = vector.load %arg3[%c40, %c0_11] : memref<56x128xf32, #tpu.memory_space<vmem>>, vector<1x1xf32>
    %c48 = arith.constant 48 : index
    %c0_12 = arith.constant 0 : index
    %11 = vector.load %arg3[%c48, %c0_12] : memref<56x128xf32, #tpu.memory_space<vmem>>, vector<1x1xf32>
    %c0_13 = arith.constant 0 : index
    %c0_14 = arith.constant 0 : index
    %12 = vector.load %arg4[%c0_13, %c0_14] : memref<8x1xf32, #tpu.memory_space<vmem>>, vector<8x1xf32>
    %13 = vector.shape_cast %0 : vector<1x8x2xbf16> to vector<8x2xbf16>
    %cst = arith.constant dense<0.000000e+00> : vector<8x4xf32>
    %14 = tpu.matmul %13, %3, %cst {dimension_numbers = #tpu.dot_dimension_numbers<[1], [0], [0], [1], [0, 0, 1, 1], [], []>} : vector<8x2xbf16>, vector<2x4xbf16>, vector<8x4xf32> -> vector<8x4xf32>
    %15 = vector.shape_cast %14 : vector<8x4xf32> to vector<1x8x4xf32>
    %16 = arith.truncf %15 : vector<1x8x4xf32> to vector<1x8x4xbf16>
    "tpu.trace_start"() <{level = 10 : i32, message = "bij,bjf->bif"}> : () -> ()
    %cst_15 = arith.constant dense<0.000000e+00> : vector<1x8x4xf32>
    %17 = tpu.matmul %1, %16, %cst_15 {dimension_numbers = #tpu.dot_dimension_numbers<[2], [1], [1], [2], [0, 0, 0, 1, 1, 2], [0], [0]>} : vector<1x8x8xbf16>, vector<1x8x4xbf16>, vector<1x8x4xf32> -> vector<1x8x4xf32>
    "tpu.trace_stop"() : () -> ()
    %18 = vector.shape_cast %4 : vector<1x4xf32> to vector<1x1x4xf32>
    %19 = vector.broadcast %18 : vector<1x1x4xf32> to vector<1x8x4xf32>
    %20 = arith.addf %17, %19 : vector<1x8x4xf32>
    %cst_16 = arith.constant 0.000000e+00 : f32
    %21 = vector.broadcast %cst_16 : f32 to vector<1x8x4xf32>
    %22 = arith.maximumf %20, %21 : vector<1x8x4xf32>
    %23 = arith.truncf %22 : vector<1x8x4xf32> to vector<1x8x4xbf16>
    %24 = vector.shape_cast %23 : vector<1x8x4xbf16> to vector<8x4xbf16>
    %cst_17 = arith.constant dense<0.000000e+00> : vector<8x6xf32>
    %25 = tpu.matmul %24, %6, %cst_17 {dimension_numbers = #tpu.dot_dimension_numbers<[1], [0], [0], [1], [0, 0, 1, 1], [], []>} : vector<8x4xbf16>, vector<4x6xbf16>, vector<8x6xf32> -> vector<8x6xf32>
    %26 = vector.shape_cast %25 : vector<8x6xf32> to vector<1x8x6xf32>
    %27 = arith.truncf %26 : vector<1x8x6xf32> to vector<1x8x6xbf16>
    "tpu.trace_start"() <{level = 10 : i32, message = "bij,bjf->bif"}> : () -> ()
    %cst_18 = arith.constant dense<0.000000e+00> : vector<1x8x6xf32>
    %28 = tpu.matmul %1, %27, %cst_18 {dimension_numbers = #tpu.dot_dimension_numbers<[2], [1], [1], [2], [0, 0, 0, 1, 1, 2], [0], [0]>} : vector<1x8x8xbf16>, vector<1x8x6xbf16>, vector<1x8x6xf32> -> vector<1x8x6xf32>
    "tpu.trace_stop"() : () -> ()
    %29 = vector.shape_cast %7 : vector<1x6xf32> to vector<1x1x6xf32>
    %30 = vector.broadcast %29 : vector<1x1x6xf32> to vector<1x8x6xf32>
    %31 = arith.addf %28, %30 : vector<1x8x6xf32>
    %cst_19 = arith.constant 0.000000e+00 : f32
    %32 = vector.broadcast %cst_19 : f32 to vector<1x8x6xf32>
    %33 = arith.maximumf %31, %32 : vector<1x8x6xf32>
    %34 = arith.truncf %33 : vector<1x8x6xf32> to vector<1x8x6xbf16>
    %35 = vector.shape_cast %34 : vector<1x8x6xbf16> to vector<8x6xbf16>
    %cst_20 = arith.constant dense<0.000000e+00> : vector<8x1xf32>
    %36 = tpu.matmul %35, %9, %cst_20 {dimension_numbers = #tpu.dot_dimension_numbers<[1], [0], [0], [1], [0, 0, 1, 1], [], []>} : vector<8x6xbf16>, vector<6x1xbf16>, vector<8x1xf32> -> vector<8x1xf32>
    %37 = vector.shape_cast %36 : vector<8x1xf32> to vector<1x8x1xf32>
    %38 = arith.truncf %37 : vector<1x8x1xf32> to vector<1x8x1xbf16>
    "tpu.trace_start"() <{level = 10 : i32, message = "bij,bjf->bif"}> : () -> ()
    %cst_21 = arith.constant dense<0.000000e+00> : vector<1x8x1xf32>
    %39 = tpu.matmul %1, %38, %cst_21 {dimension_numbers = #tpu.dot_dimension_numbers<[2], [1], [1], [2], [0, 0, 0, 1, 1, 2], [0], [0]>} : vector<1x8x8xbf16>, vector<1x8x1xbf16>, vector<1x8x1xf32> -> vector<1x8x1xf32>
    "tpu.trace_stop"() : () -> ()
    %40 = vector.shape_cast %10 : vector<1x1xf32> to vector<1x1x1xf32>
    %41 = vector.broadcast %40 : vector<1x1x1xf32> to vector<1x8x1xf32>
    %42 = arith.addf %39, %41 : vector<1x8x1xf32>
    %cst_22 = arith.constant 0.000000e+00 : f32
    %43 = vector.broadcast %cst_22 : f32 to vector<1x8x1xf32>
    %44 = arith.maximumf %42, %43 : vector<1x8x1xf32>
    %45 = vector.shape_cast %12 : vector<8x1xf32> to vector<1x8x1xf32>
    %46 = arith.mulf %44, %45 : vector<1x8x1xf32>
    %cst_23 = arith.constant dense<0.000000e+00> : vector<1x1xf32>
    %47 = vector.multi_reduction <add>, %46, %cst_23 [1] : vector<1x8x1xf32> to vector<1x1xf32>
    %48 = arith.addf %47, %11 : vector<1x1xf32>
    %49 = arith.negf %48 : vector<1x1xf32>
    %50 = math.exp %49 : vector<1x1xf32>
    %cst_24 = arith.constant 1.000000e+00 : f32
    %51 = vector.broadcast %cst_24 : f32 to vector<1x1xf32>
    %52 = arith.addf %51, %50 : vector<1x1xf32>
    %53 = arith.divf %51, %52 : vector<1x1xf32>
    %54 = tpu.transpose %53, [1, 0] : vector<1x1xf32> -> vector<1x1xf32>
    %55 = vector.shape_cast %54 : vector<1x1xf32> to vector<1x1x1xf32>
    %c0_25 = arith.constant 0 : index
    %c0_26 = arith.constant 0 : index
    %c0_27 = arith.constant 0 : index
    %56 = vector.load %arg5[%c0_25, %c0_26, %c0_27] : memref<1x1x1xf32, #tpu.memory_space<vmem>>, vector<1x1x1xf32>
    tpu.vector_store %arg5[%c0_25, %c0_26, %c0_27], %55 {strides = array<i32>} : memref<1x1x1xf32, #tpu.memory_space<vmem>>, vector<1x1x1xf32>,
    return
  }
  func.func @transform_0(%arg0: i32) -> (i32, i32, i32) {
    %c0_i32 = arith.constant 0 : i32
    %c0_i32_0 = arith.constant 0 : i32
    %c0_i32_1 = arith.constant 0 : i32
    return %arg0, %c0_i32, %c0_i32_0 : i32, i32, i32
  }
  func.func @transform_1(%arg0: i32) -> (i32, i32, i32) {
    %c0_i32 = arith.constant 0 : i32
    %c0_i32_0 = arith.constant 0 : i32
    %c0_i32_1 = arith.constant 0 : i32
    return %arg0, %c0_i32, %c0_i32_0 : i32, i32, i32
  }
  func.func @transform_2(%arg0: i32) -> (i32, i32) {
    %c0_i32 = arith.constant 0 : i32
    %c0_i32_0 = arith.constant 0 : i32
    %c0_i32_1 = arith.constant 0 : i32
    return %c0_i32, %c0_i32_0 : i32, i32
  }
  func.func @transform_3(%arg0: i32) -> (i32, i32) {
    %c0_i32 = arith.constant 0 : i32
    %c0_i32_0 = arith.constant 0 : i32
    %c0_i32_1 = arith.constant 0 : i32
    return %c0_i32, %c0_i32_0 : i32, i32
  }
  func.func @transform_4(%arg0: i32) -> (i32, i32, i32) {
    %c0_i32 = arith.constant 0 : i32
    %c0_i32_0 = arith.constant 0 : i32
    %c0_i32_1 = arith.constant 0 : i32
    return %arg0, %c0_i32, %c0_i32_0 : i32, i32, i32
  }
}

</mosaic_0001>

<llo_original>
// kernel: tpu_custom_call.1
$region0: #{tpu_custom_call.1}
  #allocation0 [shape = 'u32[]', space=smem, size = 0x4, offset = 0x4, fixed_abs, tag = 'smem constant byte address 0x4 - core index']
  #allocation1 [shape = 'u32[72,128]{1,0:T(1,128)}', space=vmem, size = 0x9000, scoped, tag = 'internal scratch']
  %s0 = inlined_call_operand.vmem [shape: bf16[2,8,2], index: 0, kind: input, shape index: {}]
  %s1 = inlined_call_operand.vmem [shape: bf16[2,8,8], index: 1, kind: input, shape index: {}]
  %s2 = inlined_call_operand.hbm [shape: f32[56,128], index: 2, kind: input, shape index: {}]
  %s3 = inlined_call_operand.vmem [shape: f32[8,1], index: 3, kind: input, shape index: {}]
  %s4 = inlined_call_operand.vmem [shape: f32[2,1,1], index: 4, kind: output, shape index: {}]
  %s5 = sld [smem:[#allocation0]]
  $region53: #{tpu_custom_call.1} parent=0
    _
  %s7 = ssub.s32 1, %s5
  %s8 = scalar_select 0, %s7, %s5
  $region1: #{tpu_custom_call.1} parent=0
    #allocation2 [shape = 'u8[28672]{0}', space=vmem, size = 0x7000, scoped, tag = 'input window, operand 2, single buffered']
    #allocation3 [shape = 's32[2]{0}', space=sflag, size = 0x8, scoped, tag = 'scoped memory for tpu_custom_call.1']
    %9 = vsyncpa [#allocation3], 0
    loop: start=0, step=1, limit=4
    $region2: #{tpu_custom_call.1} parent=1 // loop_pre_header
      _
    $region3: #{tpu_custom_call.1} parent=1 // loop_header
      %s11 = sphi 0, %s15
      %p12 = scmp.ge.s32.totalorder %s11, 4
      %s21 = sphi 0, %s23
      %s24 = sphi 0, %s21
      %s25 = sphi 0, %s24
      %s41 = sphi 0, %s25
      %s47 = sphi 0, %s49
      %s50 = sphi 0, %s47
      %s51 = sphi 0, %s50
      %s67 = sphi 0, %s51
      %s71 = sphi 0, %s71
      %s73 = sphi 0, %s71
      %s74 = sphi 0, %s73
      %s88 = sphi 0, %s74
      %s92 = sphi 0, %s92
      %s94 = sphi 0, %s92
      %s95 = sphi 0, %s94
      %s109 = sphi 0, %s95
      %s115 = sphi 0, %s117
      %s118 = sphi 0, %s115
      %s119 = sphi 0, %s118
      %s135 = sphi 0, %s119
    $region4: #{tpu_custom_call.1} parent=1 // loop_header_branch
      %14 = sbr.rel (%p12) target = $region8
    $region5: #{tpu_custom_call.1} parent=1 // loop_body
      %s16 = ssub.s32 %s11, 1
      %s17 = ssub.s32 %s11, 2
      %s18 = sadd.s32 %s11, 1
      %s19 = ssub.s32 %s11, %s18
      %p20 = scmp.eq.s32.totalorder %s19, 0
      %s22 = sadd.s32 %s21, 1
      %s23 = scalar_select %p20, %s21, %s22
      %p26 = pneg %p20
      %p27 = scmp.eq.s32.totalorder %s11, 1
      %p28 = por %p26, %p27
      %p29 = scmp.ne.s32.totalorder %s21, %s24
      %p30 = scmp.eq.s32.totalorder %s11, 0
      %p31 = por %p29, %p30
      %p32 = scmp.ne.s32.totalorder %s21, %s24
      %p33 = scmp.eq.s32.totalorder %s16, 1
      %p34 = por %p32, %p33
      %p35 = scmp.ne.s32.totalorder %s24, %s25
      %p36 = scmp.eq.s32.totalorder %s16, 0
      %p37 = por %p35, %p36
      %p38 = scmp.ne.s32.totalorder %s24, %s25
      %p39 = scmp.eq.s32.totalorder %s17, 1
      %p40 = por %p38, %p39
      %p42 = scmp.ne.s32.totalorder %s25, %s41
      %p43 = scmp.eq.s32.totalorder %s17, 0
      %p44 = por %p42, %p43
      %s45 = ssub.s32 %s11, %s18
      %p46 = scmp.eq.s32.totalorder %s45, 0
      %s48 = sadd.s32 %s47, 1
      %s49 = scalar_select %p46, %s47, %s48
      %p52 = pneg %p46
      %p53 = scmp.eq.s32.totalorder %s11, 1
      %p54 = por %p52, %p53
      %p55 = scmp.ne.s32.totalorder %s47, %s50
      %p56 = scmp.eq.s32.totalorder %s11, 0
      %p57 = por %p55, %p56
      %p58 = scmp.ne.s32.totalorder %s47, %s50
      %p59 = scmp.eq.s32.totalorder %s16, 1
      %p60 = por %p58, %p59
      %p61 = scmp.ne.s32.totalorder %s50, %s51
      %p62 = scmp.eq.s32.totalorder %s16, 0
      %p63 = por %p61, %p62
      %p64 = scmp.ne.s32.totalorder %s50, %s51
      %p65 = scmp.eq.s32.totalorder %s17, 1
      %p66 = por %p64, %p65
      %p68 = scmp.ne.s32.totalorder %s51, %s67
      %p69 = scmp.eq.s32.totalorder %s17, 0
      %p70 = por %p68, %p69
      %s72 = sadd.s32 %s71, 1
      %p75 = scmp.eq.s32.totalorder %s11, 1
      %p76 = scmp.ne.s32.totalorder %s71, %s73
      %p77 = scmp.eq.s32.totalorder %s11, 0
      %p78 = por %p76, %p77
      %p79 = scmp.ne.s32.totalorder %s71, %s73
      %p80 = scmp.eq.s32.totalorder %s16, 1
      %p81 = por %p79, %p80
      %p82 = scmp.ne.s32.totalorder %s73, %s74
      %p83 = scmp.eq.s32.totalorder %s16, 0
      %p84 = por %p82, %p83
      %p85 = scmp.ne.s32.totalorder %s73, %s74
      %p86 = scmp.eq.s32.totalorder %s17, 1
      %p87 = por %p85, %p86
      %p89 = scmp.ne.s32.totalorder %s74, %s88
      %p90 = scmp.eq.s32.totalorder %s17, 0
      %p91 = por %p89, %p90
      %s93 = sadd.s32 %s92, 1
      %p96 = scmp.eq.s32.totalorder %s11, 1
      %p97 = scmp.ne.s32.totalorder %s92, %s94
      %p98 = scmp.eq.s32.totalorder %s11, 0
      %p99 = por %p97, %p98
      %p100 = scmp.ne.s32.totalorder %s92, %s94
      %p101 = scmp.eq.s32.totalorder %s16, 1
      %p102 = por %p100, %p101
      %p103 = scmp.ne.s32.totalorder %s94, %s95
      %p104 = scmp.eq.s32.totalorder %s16, 0
      %p105 = por %p103, %p104
      %p106 = scmp.ne.s32.totalorder %s94, %s95
      %p107 = scmp.eq.s32.totalorder %s17, 1
      %p108 = por %p106, %p107
      %p110 = scmp.ne.s32.totalorder %s95, %s109
      %p111 = scmp.eq.s32.totalorder %s17, 0
      %p112 = por %p110, %p111
      %s113 = ssub.s32 %s11, %s18
      %p114 = scmp.eq.s32.totalorder %s113, 0
      %s116 = sadd.s32 %s115, 1
      %s117 = scalar_select %p114, %s115, %s116
      %p120 = pneg %p114
      %p121 = scmp.eq.s32.totalorder %s11, 1
      %p122 = por %p120, %p121
      %p123 = scmp.ne.s32.totalorder %s115, %s118
      %p124 = scmp.eq.s32.totalorder %s11, 0
      %p125 = por %p123, %p124
      %p126 = scmp.ne.s32.totalorder %s115, %s118
      %p127 = scmp.eq.s32.totalorder %s16, 1
      %p128 = por %p126, %p127
      %p129 = scmp.ne.s32.totalorder %s118, %s119
      %p130 = scmp.eq.s32.totalorder %s16, 0
      %p131 = por %p129, %p130
      %p132 = scmp.ne.s32.totalorder %s118, %s119
      %p133 = scmp.eq.s32.totalorder %s17, 1
      %p134 = por %p132, %p133
      %p136 = scmp.ne.s32.totalorder %s119, %s135
      %p137 = scmp.eq.s32.totalorder %s17, 0
      %p138 = por %p136, %p137
      %p139 = scmp.le.s32.totalorder 1, %s11
      %p140 = scmp.lt.s32.totalorder %s11, 3
      %p141 = pnand %p139, %p140
      %p142 = pneg %p141
      // Predicated region
      $region9: #{tpu_custom_call.1} parent=5 // pred_check
        _
      $region10: #{tpu_custom_call.1} parent=5 // pred_check_branch
        %144 = sbr.rel (%p141) target = $region12
      $region11: #{tpu_custom_call.1} parent=5 // pred_region
        %s145 = ssub.s32 %s11, 1
        // Predicated region
        $region13: #{tpu_custom_call.1} parent=11 // pred_check
          %p146 = pneg %p84
        $region14: #{tpu_custom_call.1} parent=11 // pred_check_branch
          %148 = sbr.rel (%p146) target = $region16
        $region15: #{tpu_custom_call.1} parent=11 // pred_region
          %150 = vsyncadd [#allocation3], 0
          %s151 = sshll.u32 %s2, 4
          %s152 = int_to_ptr.hbm [resolvable:$true] %s151
          %s153 = sshll.u32 [#allocation2], 4
          %s154 = int_to_ptr.vmem [resolvable:$true] %s153
          %159 = dma.hbm_to_vmem [thread:$0]  %s152, 896, %s154, [#allocation3], 128, 128, 8
        $region16: #{tpu_custom_call.1} parent=11 // pred_fallthru
          _
        // Predicated region
        $region17: #{tpu_custom_call.1} parent=11 // pred_check
          %p160 = pneg %p105
        $region18: #{tpu_custom_call.1} parent=11 // pred_check_branch
          %162 = sbr.rel (%p160) target = $region20
        $region19: #{tpu_custom_call.1} parent=11 // pred_region
          _
        $region20: #{tpu_custom_call.1} parent=11 // pred_fallthru
          _
      $region12: #{tpu_custom_call.1} parent=5 // pred_fallthru
        _
      %p163 = scmp.lt.s32.totalorder %s11, 2
      // Predicated region
      $region21: #{tpu_custom_call.1} parent=5 // pred_check
        %p164 = pneg %p163
      $region22: #{tpu_custom_call.1} parent=5 // pred_check_branch
        %166 = sbr.rel (%p164) target = $region24
      $region23: #{tpu_custom_call.1} parent=5 // pred_region
        // Predicated region
        $region25: #{tpu_custom_call.1} parent=23 // pred_check
          %p167 = pneg %p31
        $region26: #{tpu_custom_call.1} parent=23 // pred_check_branch
          %169 = sbr.rel (%p167) target = $region28
        $region27: #{tpu_custom_call.1} parent=23 // pred_region
          %p170 = scmp.lt.s32.totalorder %s11, 1
          %s171 = scalar_select %p170, %s11, 1
          %s172 = smul.addr %s171, 4
          %s173 = scalar_lea.vmem %s0, %s172
        $region28: #{tpu_custom_call.1} parent=23 // pred_fallthru
          _
        // Predicated region
        $region29: #{tpu_custom_call.1} parent=23 // pred_check
          %p174 = pneg %p57
        $region30: #{tpu_custom_call.1} parent=23 // pred_check_branch
          %176 = sbr.rel (%p174) target = $region32
        $region31: #{tpu_custom_call.1} parent=23 // pred_region
          %p177 = scmp.lt.s32.totalorder %s11, 1
          %s178 = scalar_select %p177, %s11, 1
          %s179 = smul.addr %s178, 4
          %s180 = scalar_lea.vmem %s1, %s179
        $region32: #{tpu_custom_call.1} parent=23 // pred_fallthru
          _
      $region24: #{tpu_custom_call.1} parent=5 // pred_fallthru
        _
      %p181 = scmp.le.s32.totalorder 1, %s11
      %p182 = scmp.lt.s32.totalorder %s11, 3
      %p183 = pnand %p181, %p182
      %p184 = pneg %p183
      // Predicated region
      $region33: #{tpu_custom_call.1} parent=5 // pred_check
        _
      $region34: #{tpu_custom_call.1} parent=5 // pred_check_branch
        %186 = sbr.rel (%p183) target = $region36
      $region35: #{tpu_custom_call.1} parent=5 // pred_region
        %s187 = ssub.s32 %s11, 1
        // Predicated region
        $region37: #{tpu_custom_call.1} parent=35 // pred_check
          %p188 = pneg %p84
        $region38: #{tpu_custom_call.1} parent=35 // pred_check_branch
          %190 = sbr.rel (%p188) target = $region40
        $region39: #{tpu_custom_call.1} parent=35 // pred_region
          %192 = dma.done [#allocation3], 896
        $region40: #{tpu_custom_call.1} parent=35 // pred_fallthru
          _
        %p193 = scmp.lt.s32.totalorder %s16, 1
        %s194 = scalar_select %p193, %s16, 1
        %s195 = smul.addr %s194, 4
        %s196 = scalar_lea.vmem %s0, %s195
        %p197 = pneg %p37
        %p198 = pneg %p34
        %p199 = scmp.lt.s32.totalorder %s16, 1
        %s200 = scalar_select %p199, %s16, 1
        %s201 = smul.addr %s200, 4
        %s202 = scalar_lea.vmem %s1, %s201
        %p203 = pneg %p63
        %p204 = pneg %p60
        %p205 = pneg %p84
        %p206 = pneg %p81
        %p207 = pneg %p105
        %p208 = pneg %p102
        %p209 = pneg %p131
        %p210 = pneg %p128
        %p211 = scmp.lt.s32.totalorder %s16, 1
        %s212 = scalar_select %p211, %s16, 1
        %s213 = scalar_lea.vmem %s4, %s212
        %p214 = scmp.lt.s32.totalorder %s16, 1
        %s215 = scalar_select %p214, %s16, 1
        %s216 = smul.addr %s215, 4
        %s217 = scalar_lea.vmem %s0, %s216
        %p218 = scmp.lt.s32.totalorder %s16, 1
        %s219 = scalar_select %p218, %s16, 1
        %s220 = smul.addr %s219, 4
        %s221 = scalar_lea.vmem %s1, %s220
        %p222 = scmp.lt.s32.totalorder %s16, 1
        %s223 = scalar_select %p222, %s16, 1
        %s224 = scalar_lea.vmem %s4, %s223
        %v226 = vld [vmem:[%s217] sm:$0xf]
        %v227 = vld [vmem:[%s221] sm:$0xf]
        %v228 = vld [vmem:[#allocation2] sm:$0x3]
        %v229 = vpack.c.bf16 %v228, %v228
        %v230 = vld [vmem:[#allocation2 + $0x8] sm:$0x1]
        %v231 = vld [vmem:[#allocation2 + $0x10] sm:$0xf]
        %v232 = vpack.c.bf16 %v231, %v231
        %v233 = vld [vmem:[#allocation2 + $0x18] sm:$0x1]
        %v234 = vld [vmem:[#allocation2 + $0x20] sm:$0x3f]
        %v235 = vpack.c.bf16 %v234, %v234
        %v236 = vld [vmem:[#allocation2 + $0x28] sm:$0x1]
        %v237 = vld [vmem:[#allocation2 + $0x30] sm:$0x1]
        %v238 = vld [vmem:[%s3] sm:$0xff]
        %vm239 = vcmask 15360
        %v241 = vsel %vm239, %v226, 0
        %vm243 = vcmask 1040384
        %v245 = vsel %vm243, %v229, 0
        %247 = vmatpush.bf16.msra.mxu0 0
        %248 = vmatpush.bf16.msra.mxu0 0
        %249 = vmatpush.bf16.msra.mxu0 0
        %250 = vmatpush.bf16.msra.mxu0 0
        %251 = vmatpush.bf16.msra.mxu0 0
        %252 = vmatpush.bf16.msra.mxu0 0
        %253 = vmatpush.bf16.msra.mxu0 0
        %254 = vmatpush.bf16.msra.mxu0 %v245
        %255 = vmatmul.bf16.gmra.mxu0 %v241
        %v256 = vpop.f32.mrf.mxu0
        %v257 = vadd.f32 0.0, %v256
        %v258 = vpop.f32.mrf.mxu0
        %259 = vdwg.mxu0
        %v260 = vpack.c.bf16 %v257, %v257
        %v261 = vperm.slane %v230, 0
        %vm262 = vcmask 64512
        %v264 = vsel %vm262, %v227, 0
        %vm266 = vcmask 1043456
        %v268 = vsel %vm266, %v260, 0
        %270 = vmatpush.bf16.msra.mxu0 0
        %271 = vmatpush.bf16.msra.mxu0 0
        %272 = vmatpush.bf16.msra.mxu0 0
        %273 = vmatpush.bf16.msra.mxu0 0
        %274 = vmatpush.bf16.msra.mxu0 0
        %275 = vmatpush.bf16.msra.mxu0 0
        %276 = vmatpush.bf16.msra.mxu0 0
        %277 = vmatpush.bf16.msra.mxu0 %v268
        %278 = vmatmul.bf16.gmra.mxu0 %v264
        %v279 = vpop.f32.mrf.mxu0
        %v280 = vadd.f32 %v261, %v279
        %v281 = vpop.f32.mrf.mxu0
        %282 = vdwg.mxu0
        %v283 = vmax.f32 %v280, 0.0
        %v284 = vpack.c.bf16 %v283, %v283
        %vm285 = vcmask 31744
        %v287 = vsel %vm285, %v284, 0
        %vm289 = vcmask 1041408
        %v291 = vsel %vm289, %v232, 0
        %293 = vmatpush.bf16.msra.mxu0 0
        %294 = vmatpush.bf16.msra.mxu0 0
        %295 = vmatpush.bf16.msra.mxu0 0
        %296 = vmatpush.bf16.msra.mxu0 0
        %297 = vmatpush.bf16.msra.mxu0 0
        %298 = vmatpush.bf16.msra.mxu0 0
        %299 = vmatpush.bf16.msra.mxu0 0
        %300 = vmatpush.bf16.msra.mxu0 %v291
        %301 = vmatmul.bf16.gmra.mxu0 %v287
        %v302 = vpop.f32.mrf.mxu0
        %v303 = vadd.f32 0.0, %v302
        %v304 = vpop.f32.mrf.mxu0
        %305 = vdwg.mxu0
        %v306 = vpack.c.bf16 %v303, %v303
        %v307 = vperm.slane %v233, 0
        %v309 = vsel %vm266, %v306, 0
        %311 = vmatpush.bf16.msra.mxu0 0
        %312 = vmatpush.bf16.msra.mxu0 0
        %313 = vmatpush.bf16.msra.mxu0 0
        %314 = vmatpush.bf16.msra.mxu0 0
        %315 = vmatpush.bf16.msra.mxu0 0
        %316 = vmatpush.bf16.msra.mxu0 0
        %317 = vmatpush.bf16.msra.mxu0 0
        %318 = vmatpush.bf16.msra.mxu0 %v309
        %319 = vmatmul.bf16.gmra.mxu0 %v264
        %v320 = vpop.f32.mrf.mxu0
        %v321 = vadd.f32 %v307, %v320
        %v322 = vpop.f32.mrf.mxu0
        %323 = vdwg.mxu0
        %v324 = vmax.f32 %v321, 0.0
        %v325 = vpack.c.bf16 %v324, %v324
        %vm326 = vcmask 48128
        %v328 = vsel %vm326, %v325, 0
        %vm330 = vcmask 1042432
        %v332 = vsel %vm330, %v235, 0
        %334 = vmatpush.bf16.msra.mxu0 0
        %335 = vmatpush.bf16.msra.mxu0 0
        %336 = vmatpush.bf16.msra.mxu0 0
        %337 = vmatpush.bf16.msra.mxu0 0
        %338 = vmatpush.bf16.msra.mxu0 0
        %339 = vmatpush.bf16.msra.mxu0 0
        %340 = vmatpush.bf16.msra.mxu0 0
        %341 = vmatpush.bf16.msra.mxu0 %v332
        %342 = vmatmul.bf16.gmra.mxu0 %v328
        %v343 = vpop.f32.mrf.mxu0
        %v344 = vadd.f32 0.0, %v343
        %v345 = vpop.f32.mrf.mxu0
        %346 = vdwg.mxu0
        %v347 = vpack.c.bf16 %v344, %v344
        %v348 = vperm.slane %v236, 0
        %v350 = vsel %vm266, %v347, 0
        %352 = vmatpush.bf16.msra.mxu0 0
        %353 = vmatpush.bf16.msra.mxu0 0
        %354 = vmatpush.bf16.msra.mxu0 0
        %355 = vmatpush.bf16.msra.mxu0 0
        %356 = vmatpush.bf16.msra.mxu0 0
        %357 = vmatpush.bf16.msra.mxu0 0
        %358 = vmatpush.bf16.msra.mxu0 0
        %359 = vmatpush.bf16.msra.mxu0 %v350
        %360 = vmatmul.bf16.gmra.mxu0 %v264
        %v361 = vpop.f32.mrf.mxu0
        %v362 = vadd.f32 %v348, %v361
        %v363 = vpop.f32.mrf.mxu0
        %364 = vdwg.mxu0
        %v365 = vmax.f32 %v362, 0.0
        %v366 = vmul.f32 %v365, %v238
        %vm367 = vcmask 7168
        %v368 = vsel %vm367, %v366, 0.0
        %v369 = vrot.slane %v368, 4
        %v370 = vadd.f32 %v368, %v369
        %v371 = vrot.slane %v370, 2
        %v372 = vadd.f32 %v370, %v371
        %v373 = vrot.slane %v372, 1
        %v374 = vadd.f32 %v372, %v373
        %v375 = vadd.f32 %v374, %v237
        %v376 = vxor.u32 %v375, 2147483648
        %v377 = vmul.f32 %v376, 1.442695
        %v378 = vpow.pop %v377
        %v379 = vadd.f32 %v378, 1.0
        %v380 = vrcp.pop %v379
        %v381 = vmul.f32 %v379, %v380
        %v382 = vsub.f32 1.0, %v381
        %v383 = vmul.f32 %v380, %v382
        %v384 = vadd.f32 %v380, %v383
        %vm385 = vweird.f32 %v379
        %vm386 = vweird.f32 %v380
        %vm387 = vmor %vm385, %vm386
        %v388 = vsel %vm387, %v380, %v384
        %v389 = vand.u32 2147483647, %v379
        %vm390 = vcmp.eq.f32.partialorder %v389, 8.507059e+37
        %v391 = vand.u32 %v379, 2147483648
        %v392 = vor.u32 1.1754944e-38, %v391
        %v393 = vsel %vm390, %v392, %v388
        %v394 = vmul.f32 1.0, %v393
        %395 = vxpose.xlu0.b32.start [1/16] %v394, 128
        %396 = vxpose.xlu0.b32.cont [2/16] 0.0, 128
        %397 = vxpose.xlu0.b32.cont [3/16] 0.0, 128
        %398 = vxpose.xlu0.b32.cont [4/16] 0.0, 128
        %399 = vxpose.xlu0.b32.cont [5/16] 0.0, 128
        %400 = vxpose.xlu0.b32.cont [6/16] 0.0, 128
        %401 = vxpose.xlu0.b32.cont [7/16] 0.0, 128
        %402 = vxpose.xlu0.b32.cont [8/16] 0.0, 128
        %403 = vxpose.xlu0.b32.cont [9/16] 0.0, 128
        %404 = vxpose.xlu0.b32.cont [10/16] 0.0, 128
        %405 = vxpose.xlu0.b32.cont [11/16] 0.0, 128
        %406 = vxpose.xlu0.b32.cont [12/16] 0.0, 128
        %407 = vxpose.xlu0.b32.cont [13/16] 0.0, 128
        %408 = vxpose.xlu0.b32.cont [14/16] 0.0, 128
        %409 = vxpose.xlu0.b32.cont [15/16] 0.0, 128
        %410 = vxpose.xlu0.b32.end [16/16] 0.0, 128
        %v411 = vpop.trf.xlu0
        %v412 = vpop.trf.xlu0
        %v413 = vpop.trf.xlu0
        %v414 = vpop.trf.xlu0
        %v415 = vpop.trf.xlu0
        %v416 = vpop.trf.xlu0
        %v417 = vpop.trf.xlu0
        %v418 = vpop.trf.xlu0
        %v419 = vpop.trf.xlu0
        %v420 = vpop.trf.xlu0
        %v421 = vpop.trf.xlu0
        %v422 = vpop.trf.xlu0
        %v423 = vpop.trf.xlu0
        %v424 = vpop.trf.xlu0
        %v425 = vpop.trf.xlu0
        %v426 = vpop.trf.xlu0
        %vm427 = vcmask 0
        %428 = vst.msk [vmem:[%s224] sm:$0x1] %vm427, %v411
        %p429 = scmp.lt.s32.totalorder %s16, 1
        %s430 = scalar_select %p429, %s16, 1
        %s431 = scalar_lea.vmem %s4, %s430
        // Predicated region
        $region41: #{tpu_custom_call.1} parent=35 // pred_check
          %p432 = pneg %p128
        $region42: #{tpu_custom_call.1} parent=35 // pred_check_branch
          %434 = sbr.rel (%p432) target = $region44
        $region43: #{tpu_custom_call.1} parent=35 // pred_region
          _
        $region44: #{tpu_custom_call.1} parent=35 // pred_fallthru
          _
      $region36: #{tpu_custom_call.1} parent=5 // pred_fallthru
        _
      %p435 = scmp.le.s32.totalorder 2, %s11
      // Predicated region
      $region45: #{tpu_custom_call.1} parent=5 // pred_check
        %p436 = pneg %p435
      $region46: #{tpu_custom_call.1} parent=5 // pred_check_branch
        %438 = sbr.rel (%p436) target = $region48
      $region47: #{tpu_custom_call.1} parent=5 // pred_region
        %s439 = ssub.s32 %s11, 2
        // Predicated region
        $region49: #{tpu_custom_call.1} parent=47 // pred_check
          %p440 = pneg %p134
        $region50: #{tpu_custom_call.1} parent=47 // pred_check_branch
          %442 = sbr.rel (%p440) target = $region52
        $region51: #{tpu_custom_call.1} parent=47 // pred_region
          %p443 = scmp.lt.s32.totalorder %s17, 1
          %s444 = scalar_select %p443, %s17, 1
          %s445 = scalar_lea.vmem %s4, %s444
        $region52: #{tpu_custom_call.1} parent=47 // pred_fallthru
          _
      $region48: #{tpu_custom_call.1} parent=5 // pred_fallthru
        _
    $region6: #{tpu_custom_call.1} parent=1 // loop_footer
      %s15 = sadd.s32 1, %s11
    $region7: #{tpu_custom_call.1} parent=1 // loop_footer_branch
      %10 = sbr.rel target = $region3
    $region8: #{tpu_custom_call.1} parent=1 // loop_exit
      _
    %446 = vsyncpa [#allocation3], 1
    %s447 = scalar_lea.sflag [#allocation3], 1
    %448 = vsyncpa %s447, 1

</llo_original>
